<compile_context>
chip_gen: v6e
topology: v6e:2x2x1
jax: 0.10.0
libtpu: 0.0.40
codegen_flags: <defaults>
</compile_context>

<pallas_src>
import jax
import jax.numpy as jnp
from jax.experimental import pallas as pl
from jax.experimental.pallas import tpu as pltpu

# Safe on v5e/v6e (128 MiB physical VMEM) and v7x (64 MiB physical VMEM).
_VMEM_LIMIT_BYTES = 48 * 1024 * 1024


def _round_up(x, m):
    return ((x + m - 1) // m) * m


def _pad2(x, rows, cols):
    r, c = x.shape
    return jnp.pad(x, ((0, rows - r), (0, cols - c)))


# ----------------------------------------------------------------------------
# Kernel 1: feature transform  XW = X @ W + b   (run once; emitted as bf16)
# ----------------------------------------------------------------------------
def _transform_kernel(x_ref, w_ref, b_ref, out_ref):
    out_ref[...] = (
        jnp.dot(x_ref[...], w_ref[...], preferred_element_type=jnp.float32)
        + b_ref[...]
    ).astype(out_ref.dtype)


def _feature_transform(x, w, b, *, tm, out_dtype):
    Np, Fin = x.shape
    Hout = w.shape[1]
    return pl.pallas_call(
        _transform_kernel,
        out_shape=jax.ShapeDtypeStruct((Np, Hout), out_dtype),
        grid_spec=pltpu.PrefetchScalarGridSpec(
            num_scalar_prefetch=0,
            grid=(Np // tm,),
            in_specs=[
                pl.BlockSpec((tm, Fin), lambda i: (i, 0)),     # X row tile
                pl.BlockSpec((Fin, Hout), lambda i: (0, 0)),   # W (resident)
                pl.BlockSpec((1, Hout), lambda i: (0, 0)),     # b (resident)
            ],
            out_specs=pl.BlockSpec((tm, Hout), lambda i: (i, 0)),
        ),
        compiler_params=pltpu.CompilerParams(
            dimension_semantics=("parallel",),
            vmem_limit_bytes=_VMEM_LIMIT_BYTES,
        ),
    )(x, w, b)


# ----------------------------------------------------------------------------
# Kernel 2: propagation with fused next linear
#   out = relu(A_hat @ XW) @ W_next + b_next
# Grid: (row_tiles "parallel", K-tiles "arbitrary") with an f32 accumulator.
# ----------------------------------------------------------------------------
def _prop_kernel(xw_ref, a_ref, wn_ref, bn_ref, out_ref, acc_ref):
    k = pl.program_id(1)

    @pl.when(k == 0)
    def _():
        acc_ref[...] = jnp.zeros_like(acc_ref)

    # bf16 A tile @ bf16 XW tile on the native bf16 MXU path, f32 accumulation.
    acc_ref[...] += jnp.dot(a_ref[...], xw_ref[...],
                            preferred_element_type=jnp.float32)

    @pl.when(k == pl.num_programs(1) - 1)
    def _():
        h = jnp.maximum(acc_ref[...], 0.0)
        # Fused next linear (W_next, b_next are small, f32, VMEM-resident);
        # runs once per row tile, keeps full f32 precision for this step.
        out_ref[...] = (
            jnp.dot(h, wn_ref[...], preferred_element_type=jnp.float32)
            + bn_ref[...]
        ).astype(out_ref.dtype)


def _propagate(xw, a, w_next, b_next, *, tm, tk, out_dtype):
    Np, Hin = xw.shape
    Hout = w_next.shape[1]
    return pl.pallas_call(
        _prop_kernel,
        out_shape=jax.ShapeDtypeStruct((Np, Hout), out_dtype),
        grid_spec=pltpu.PrefetchScalarGridSpec(
            num_scalar_prefetch=0,
            grid=(Np // tm, Np // tk),
            in_specs=[
                pl.BlockSpec((tk, Hin), lambda i, k: (k, 0)),    # XW K-block
                pl.BlockSpec((tm, tk), lambda i, k: (i, k)),     # A_hat tile
                pl.BlockSpec((Hin, Hout), lambda i, k: (0, 0)),  # W_next (res.)
                pl.BlockSpec((1, Hout), lambda i, k: (0, 0)),    # b_next (res.)
            ],
            out_specs=pl.BlockSpec((tm, Hout), lambda i, k: (i, 0)),
            scratch_shapes=[pltpu.VMEM((tm, Hin), jnp.float32)],
        ),
        compiler_params=pltpu.CompilerParams(
            dimension_semantics=("parallel", "arbitrary"),
            vmem_limit_bytes=_VMEM_LIMIT_BYTES,
        ),
    )(xw, a, w_next, b_next)


# ----------------------------------------------------------------------------
# Wrapper
# ----------------------------------------------------------------------------
def gcn_forward(X, A_hat, W1, b1, W2, b2, Wfc_T, bfc, *, tile=512):
    """Full GCN forward.  `tile` is the node-dimension row/contraction tile
    (multiple of 128; 512 is a good default everywhere, 1024 is fine on v6e)."""
    N, F = X.shape
    H1 = W1.shape[1]
    H2 = W2.shape[1]
    C = Wfc_T.shape[1]

    # Lane-dense / MXU-aligned padding of every feature dim.
    Fp = _round_up(F, 128)
    H1p = _round_up(H1, 128)
    H2p = _round_up(H2, 128)
    Cp = _round_up(C, 128)

    # Node-dimension tiling (row tiles and A_hat K tiles share one size).
    if N >= tile:
        tm = tk = tile
    else:
        tm = tk = _round_up(N, 128)   # single-tile path, still 128-aligned
    Np = _round_up(N, tm)

    f32 = jnp.float32
    bf16 = jnp.bfloat16

    Xp = _pad2(X.astype(f32), Np, Fp)
    Ap = _pad2(A_hat.astype(f32), Np, Np).astype(bf16)   # dominant HBM stream
    W1p = _pad2(W1.astype(f32), Fp, H1p)
    b1p = _pad2(b1.reshape(1, -1).astype(f32), 1, H1p)
    W2p = _pad2(W2.astype(f32), H1p, H2p)
    b2p = _pad2(b2.reshape(1, -1).astype(f32), 1, H2p)
    Wfp = _pad2(Wfc_T.astype(f32), H2p, Cp)
    bfp = _pad2(bfc.reshape(1, -1).astype(f32), 1, Cp)

    # (1) XW1 = X @ W1 + b1                    (computed once, streamed as bf16)
    xw1 = _feature_transform(Xp, W1p, b1p, tm=tm, out_dtype=bf16)       # [Np,H1p]
    # (2) H1W2 = relu(A @ XW1) @ W2 + b2       (H1 never hits HBM)
    h1w2 = _propagate(xw1, Ap, W2p, b2p, tm=tm, tk=tk, out_dtype=bf16)  # [Np,H2p]
    # (3) out = relu(A @ H1W2) @ Wfc^T + bfc   (classifier head fused)
    out = _propagate(h1w2, Ap, Wfp, bfp, tm=tm, tk=tk, out_dtype=f32)   # [Np,Cp]
    return out[:N, :C]


# ----------------------------------------------------------------------------
# Reference + test
# ----------------------------------------------------------------------------
def reference_forward(X, A_hat, W1, b1, W2, b2, Wfc_T, bfc):
    hp = jax.lax.Precision.HIGHEST
    h = jnp.dot(X, W1, precision=hp) + b1
    h = jnp.maximum(jnp.dot(A_hat, h, precision=hp), 0.0)
    h = jnp.dot(h, W2, precision=hp) + b2
    h = jnp.maximum(jnp.dot(A_hat, h, precision=hp), 0.0)
    return jnp.dot(h, Wfc_T, precision=hp) + bfc


def _make_inputs(key, N, X_size, H1, H2, C):
    k_x, k_a, k_w1, k_b1, k_w2, k_b2, k_wfc, k_bfc = jax.random.split(key, 8)

    X = jax.random.normal(k_x, (N, X_size), dtype=jnp.float32)

    # Symmetric normalized adjacency A_hat = D^-1/2 (A + I) D^-1/2.
    A = (jax.random.uniform(k_a, (N, N)) > 0.5).astype(jnp.float32)
    A = jnp.maximum(A, A.T) + jnp.eye(N, dtype=jnp.float32)
    d_inv_sqrt = 1.0 / jnp.sqrt(A.sum(axis=1))
    A_hat = (A * d_inv_sqrt[:, None]) * d_inv_sqrt[None, :]

    # Parameter init mirroring the module's __init__ (weight ~ N(0, var)).
    var1 = 2.0 / (X_size + H1)
    var2 = 2.0 / (H1 + H2)
    W1 = jax.random.normal(k_w1, (X_size, H1), dtype=jnp.float32) * var1
    b1 = jax.random.normal(k_b1, (1, H1), dtype=jnp.float32) * var1
    W2 = jax.random.normal(k_w2, (H1, H2), dtype=jnp.float32) * var2
    b2 = jax.random.normal(k_b2, (1, H2), dtype=jnp.float32) * var2
    # nn.Linear(H2, C): weight [C, H2], bias [C]; kernel takes Wfc^T [H2, C].
    bound = 1.0 / jnp.sqrt(H2)
    Wfc = jax.random.uniform(k_wfc, (C, H2), minval=-bound, maxval=bound,
                             dtype=jnp.float32)
    bfc = jax.random.uniform(k_bfc, (1, C), minval=-bound, maxval=bound,
                             dtype=jnp.float32)
    return X, A_hat, W1, b1, W2, b2, Wfc.T, bfc


if __name__ == "__main__":
    key = jax.random.PRNGKey(0)
    k1, k2 = jax.random.split(key)

    # bf16 streaming of A_hat / intermediates (f32 accumulation) -> tolerance
    # loosened vs. a pure-f32 run, per the perf-review correctness note.
    ATOL = RTOL = 2e-2

    # Case 1: small, module-consistent sizes (single-tile grid).
    args1 = _make_inputs(k1, N=8, X_size=32, H1=32, H2=16, C=4)
    out1 = jax.block_until_ready(gcn_forward(*args1))
    ref1 = reference_forward(*args1)
    assert out1.shape == (8, 4)
    assert jnp.allclose(out1, ref1, atol=ATOL, rtol=RTOL), \
        float(jnp.max(jnp.abs(out1 - ref1)))

    # Case 2: exercises row/K tiling (3x3 grid), zero padding and the
    # pl.when-guarded accumulator across the A_hat contraction axis.
    args2 = _make_inputs(k2, N=300, X_size=48, H1=40, H2=24, C=7)
    out2 = jax.block_until_ready(gcn_forward(*args2, tile=128))
    ref2 = reference_forward(*args2)
    assert out2.shape == (300, 7)
    assert jnp.allclose(out2, ref2, atol=ATOL, rtol=RTOL), \
        float(jnp.max(jnp.abs(out2 - ref2)))

    print("KERNEL_OK")
</pallas_src>

<mosaic_0001>
module attributes {stable_mosaic.version = 11 : i64} {
  func.func @_transform_kernel(%arg0: i32, %arg1: memref<128x128xf32, #tpu.memory_space<vmem>>, %arg2: memref<128x128xf32, #tpu.memory_space<vmem>>, %arg3: memref<1x128xf32, #tpu.memory_space<vmem>>, %arg4: memref<128x128xbf16, #tpu.memory_space<vmem>>) attributes {dimension_semantics = [#tpu.dimension_semantics<parallel>], iteration_bounds = array<i64: 1>, scalar_prefetch = 0 : i64, scratch_operands = 0 : i64, tpu.core_type = #tpu.core_type<tc>, window_params = [{transform_indices = @transform_0, window_bounds = array<i64: 128, 128>}, {pipeline_mode = #tpu.pipeline_mode<synchronous>, transform_indices = @transform_1, window_bounds = array<i64: 128, 128>}, {pipeline_mode = #tpu.pipeline_mode<synchronous>, transform_indices = @transform_2, window_bounds = array<i64: 1, 128>}, {transform_indices = @transform_3, window_bounds = array<i64: 128, 128>}]} {
    %c0 = arith.constant 0 : index
    %c0_0 = arith.constant 0 : index
    %0 = vector.load %arg1[%c0, %c0_0] : memref<128x128xf32, #tpu.memory_space<vmem>>, vector<128x128xf32>
    %c0_1 = arith.constant 0 : index
    %c0_2 = arith.constant 0 : index
    %1 = vector.load %arg2[%c0_1, %c0_2] : memref<128x128xf32, #tpu.memory_space<vmem>>, vector<128x128xf32>
    %cst = arith.constant dense<0.000000e+00> : vector<128x128xf32>
    %2 = tpu.matmul %0, %1, %cst {dimension_numbers = #tpu.dot_dimension_numbers<[1], [0], [0], [1], [0, 0, 1, 1], [], []>} : vector<128x128xf32>, vector<128x128xf32>, vector<128x128xf32> -> vector<128x128xf32>
    %c0_3 = arith.constant 0 : index
    %c0_4 = arith.constant 0 : index
    %3 = vector.load %arg3[%c0_3, %c0_4] : memref<1x128xf32, #tpu.memory_space<vmem>>, vector<1x128xf32>
    %4 = vector.broadcast %3 : vector<1x128xf32> to vector<128x128xf32>
    %5 = arith.addf %2, %4 : vector<128x128xf32>
    %6 = arith.truncf %5 : vector<128x128xf32> to vector<128x128xbf16>
    %c0_5 = arith.constant 0 : index
    %c0_6 = arith.constant 0 : index
    %7 = vector.load %arg4[%c0_5, %c0_6] : memref<128x128xbf16, #tpu.memory_space<vmem>>, vector<128x128xbf16>
    tpu.vector_store %arg4[%c0_5, %c0_6], %6 {strides = array<i32>} : memref<128x128xbf16, #tpu.memory_space<vmem>>, vector<128x128xbf16>,
    return
  }
  func.func @transform_0(%arg0: i32) -> (i32, i32) {
    %c0_i32 = arith.constant 0 : i32
    %c0_i32_0 = arith.constant 0 : i32
    return %arg0, %c0_i32 : i32, i32
  }
  func.func @transform_1(%arg0: i32) -> (i32, i32) {
    %c0_i32 = arith.constant 0 : i32
    %c0_i32_0 = arith.constant 0 : i32
    %c0_i32_1 = arith.constant 0 : i32
    return %c0_i32, %c0_i32_0 : i32, i32
  }
  func.func @transform_2(%arg0: i32) -> (i32, i32) {
    %c0_i32 = arith.constant 0 : i32
    %c0_i32_0 = arith.constant 0 : i32
    %c0_i32_1 = arith.constant 0 : i32
    return %c0_i32, %c0_i32_0 : i32, i32
  }
  func.func @transform_3(%arg0: i32) -> (i32, i32) {
    %c0_i32 = arith.constant 0 : i32
    %c0_i32_0 = arith.constant 0 : i32
    return %arg0, %c0_i32 : i32, i32
  }
}

</mosaic_0001>

<llo_original>
// kernel: tpu_custom_call.1
$region0: #{tpu_custom_call.1}
  #allocation0 [shape = 'u32[]', space=smem, size = 0x4, offset = 0x4, fixed_abs, tag = 'smem constant byte address 0x4 - core index']
  #allocation1 [shape = 'u32[144,128]{1,0:T(1,128)}', space=vmem, size = 0x12000, scoped, tag = 'internal scratch']
  %s0 = inlined_call_operand.hbm [shape: f32[128,128], index: 0, kind: input, shape index: {}]
  %s1 = inlined_call_operand.hbm [shape: f32[128,128], index: 1, kind: input, shape index: {}]
  %s2 = inlined_call_operand.vmem [shape: f32[1,128], index: 2, kind: input, shape index: {}]
  %s3 = inlined_call_operand.hbm [shape: bf16[128,128], index: 3, kind: output, shape index: {}]
  %s4 = sld [smem:[#allocation0]]
  $region30: #{tpu_custom_call.1} parent=0
    _
  %s6 = ssub.s32 1, %s4
  %s7 = scalar_select 0, %s6, %s4
  $region1: #{tpu_custom_call.1} parent=0
    #allocation2 [shape = 'u8[65536]{0}', space=vmem, size = 0x10000, scoped, tag = 'input window, operand 0, single buffered']
    #allocation3 [shape = 's32[1]{0}', space=sflag, size = 0x4, scoped, tag = 'scoped memory for tpu_custom_call.1']
    #allocation4 [shape = 's32[1]{0}', space=sflag, size = 0x4, scoped, tag = 'scoped memory for tpu_custom_call.1']
    #allocation5 [shape = 'u8[65536]{0}', space=vmem, size = 0x10000, scoped, tag = 'input window, operand 1, single buffered']
    #allocation6 [shape = 's32[1]{0}', space=sflag, size = 0x4, scoped, tag = 'scoped memory for tpu_custom_call.1']
    #allocation7 [shape = 'u8[32768]{0}', space=vmem, size = 0x8000, scoped, tag = 'output window, operand 0, single buffered']
    %8 = vsyncpa [#allocation3], 0
    %9 = vsyncpa [#allocation6], 0
    %10 = vsyncpa [#allocation4], 0
    // Predicated region
    $region2: #{tpu_custom_call.1} parent=1 // pred_check
      _
    $region3: #{tpu_custom_call.1} parent=1 // pred_check_branch
      %12 = sbr.rel (0) target = $region5
    $region4: #{tpu_custom_call.1} parent=1 // pred_region
      %s14 = ssub.s32 2048, 2048
      %15 = vsyncadd [#allocation3], %s14
      %s16 = sshll.u32 [#allocation2], 4
      %s17 = int_to_ptr.vmem [resolvable:$true] %s16
      %22 = dma.hbm_to_vmem [thread:$0]  %s0, 2048, %s17, [#allocation3], 128, 128, 8
    $region5: #{tpu_custom_call.1} parent=1 // pred_fallthru
      _
    // Predicated region
    $region6: #{tpu_custom_call.1} parent=1 // pred_check
      _
    $region7: #{tpu_custom_call.1} parent=1 // pred_check_branch
      %24 = sbr.rel (0) target = $region9
    $region8: #{tpu_custom_call.1} parent=1 // pred_region
      %s26 = ssub.s32 2048, 2048
      %27 = vsyncadd [#allocation6], %s26
      %s28 = sshll.u32 [#allocation5], 4
      %s29 = int_to_ptr.vmem [resolvable:$true] %s28
      %34 = dma.hbm_to_vmem [thread:$0]  %s1, 2048, %s29, [#allocation6], 128, 128, 8
    $region9: #{tpu_custom_call.1} parent=1 // pred_fallthru
      _
    // Predicated region
    $region10: #{tpu_custom_call.1} parent=1 // pred_check
      _
    $region11: #{tpu_custom_call.1} parent=1 // pred_check_branch
      %36 = sbr.rel (0) target = $region13
    $region12: #{tpu_custom_call.1} parent=1 // pred_region
      _
    $region13: #{tpu_custom_call.1} parent=1 // pred_fallthru
      _
    // Predicated region
    $region14: #{tpu_custom_call.1} parent=1 // pred_check
      _
    $region15: #{tpu_custom_call.1} parent=1 // pred_check_branch
      %38 = sbr.rel (0) target = $region17
    $region16: #{tpu_custom_call.1} parent=1 // pred_region
      %39 = dma.done [#allocation3], 2048
    $region17: #{tpu_custom_call.1} parent=1 // pred_fallthru
      _
    // Predicated region
    $region18: #{tpu_custom_call.1} parent=1 // pred_check
      _
    $region19: #{tpu_custom_call.1} parent=1 // pred_check_branch
      %41 = sbr.rel (0) target = $region21
    $region20: #{tpu_custom_call.1} parent=1 // pred_region
      %42 = dma.done [#allocation6], 2048
    $region21: #{tpu_custom_call.1} parent=1 // pred_fallthru
      _
    %v43 = vld [vmem:[#allocation2] sm:$0xff]
    %v44 = vld [vmem:[#allocation2 + $0x8] sm:$0xff]
    %v45 = vld [vmem:[#allocation2 + $0x10] sm:$0xff]
    %v46 = vld [vmem:[#allocation2 + $0x18] sm:$0xff]
    %v47 = vld [vmem:[#allocation2 + $0x20] sm:$0xff]
    %v48 = vld [vmem:[#allocation2 + $0x28] sm:$0xff]
    %v49 = vld [vmem:[#allocation2 + $0x30] sm:$0xff]
    %v50 = vld [vmem:[#allocation2 + $0x38] sm:$0xff]
    %v51 = vld [vmem:[#allocation2 + $0x40] sm:$0xff]
    %v52 = vld [vmem:[#allocation2 + $0x48] sm:$0xff]
    %v53 = vld [vmem:[#allocation2 + $0x50] sm:$0xff]
    %v54 = vld [vmem:[#allocation2 + $0x58] sm:$0xff]
    %v55 = vld [vmem:[#allocation2 + $0x60] sm:$0xff]
    %v56 = vld [vmem:[#allocation2 + $0x68] sm:$0xff]
    %v57 = vld [vmem:[#allocation2 + $0x70] sm:$0xff]
    %v58 = vld [vmem:[#allocation2 + $0x78] sm:$0xff]
    %v59 = vld [vmem:[#allocation5] sm:$0xff]
    %v60 = vld [vmem:[#allocation5 + $0x8] sm:$0xff]
    %v61 = vld [vmem:[#allocation5 + $0x10] sm:$0xff]
    %v62 = vld [vmem:[#allocation5 + $0x18] sm:$0xff]
    %v63 = vld [vmem:[#allocation5 + $0x20] sm:$0xff]
    %v64 = vld [vmem:[#allocation5 + $0x28] sm:$0xff]
    %v65 = vld [vmem:[#allocation5 + $0x30] sm:$0xff]
    %v66 = vld [vmem:[#allocation5 + $0x38] sm:$0xff]
    %v67 = vld [vmem:[#allocation5 + $0x40] sm:$0xff]
    %v68 = vld [vmem:[#allocation5 + $0x48] sm:$0xff]
    %v69 = vld [vmem:[#allocation5 + $0x50] sm:$0xff]
    %v70 = vld [vmem:[#allocation5 + $0x58] sm:$0xff]
    %v71 = vld [vmem:[#allocation5 + $0x60] sm:$0xff]
    %v72 = vld [vmem:[#allocation5 + $0x68] sm:$0xff]
    %v73 = vld [vmem:[#allocation5 + $0x70] sm:$0xff]
    %v74 = vld [vmem:[#allocation5 + $0x78] sm:$0xff]
    %v75 = vld [vmem:[%s2] sm:$0x1]
    %v77 = vlaneseq
    %v78 = vshrl.u32 %v77, 7
    %v79 = vsub.s32 0, %v78
    %v80 = vrot.slane %v75, %v79
    %82 = vmatprep.subr.mxu0 0.0
    %83 = vmatpush1.msra.mxu0 %v74
    %84 = vmatprep.subr.mxu0 0.0
    %85 = vmatpush1.msra.mxu0 %v73
    %86 = vmatprep.subr.mxu0 0.0
    %87 = vmatpush1.msra.mxu0 %v72
    %88 = vmatprep.subr.mxu0 0.0
    %89 = vmatpush1.msra.mxu0 %v71
    %90 = vmatprep.subr.mxu0 0.0
    %91 = vmatpush1.msra.mxu0 %v70
    %92 = vmatprep.subr.mxu0 0.0
    %93 = vmatpush1.msra.mxu0 %v69
    %94 = vmatprep.subr.mxu0 0.0
    %95 = vmatpush1.msra.mxu0 %v68
    %96 = vmatprep.subr.mxu0 0.0
    %97 = vmatpush1.msra.mxu0 %v67
    %98 = vmatprep.subr.mxu0 0.0
    %99 = vmatpush1.msra.mxu0 %v66
    %100 = vmatprep.subr.mxu0 0.0
    %101 = vmatpush1.msra.mxu0 %v65
    %102 = vmatprep.subr.mxu0 0.0
    %103 = vmatpush1.msra.mxu0 %v64
    %104 = vmatprep.subr.mxu0 0.0
    %105 = vmatpush1.msra.mxu0 %v63
    %106 = vmatprep.subr.mxu0 0.0
    %107 = vmatpush1.msra.mxu0 %v62
    %108 = vmatprep.subr.mxu0 0.0
    %109 = vmatpush1.msra.mxu0 %v61
    %110 = vmatprep.subr.mxu0 0.0
    %111 = vmatpush1.msra.mxu0 %v60
    %112 = vmatprep.subr.mxu0 0.0
    %113 = vmatpush1.msra.mxu0 %v59
    %114 = vmatprep.subr.mxu0 0.0
    %115 = vmatpush2.msra.mxu0 0.0
    %116 = vmatprep.subr.mxu0 0.0
    %117 = vmatpush2.msra.mxu0 0.0
    %118 = vmatprep.subr.mxu0 0.0
    %119 = vmatpush2.msra.mxu0 0.0
    %120 = vmatprep.subr.mxu0 0.0
    %121 = vmatpush2.msra.mxu0 0.0
    %122 = vmatprep.subr.mxu0 0.0
    %123 = vmatpush2.msra.mxu0 0.0
    %124 = vmatprep.subr.mxu0 0.0
    %125 = vmatpush2.msra.mxu0 0.0
    %126 = vmatprep.subr.mxu0 0.0
    %127 = vmatpush2.msra.mxu0 0.0
    %128 = vmatprep.subr.mxu0 0.0
    %129 = vmatpush2.msra.mxu0 0.0
    %130 = vmatprep.subr.mxu0 0.0
    %131 = vmatpush2.msra.mxu0 0.0
    %132 = vmatprep.subr.mxu0 0.0
    %133 = vmatpush2.msra.mxu0 0.0
    %134 = vmatprep.subr.mxu0 0.0
    %135 = vmatpush2.msra.mxu0 0.0
    %136 = vmatprep.subr.mxu0 0.0
    %137 = vmatpush2.msra.mxu0 0.0
    %138 = vmatprep.subr.mxu0 0.0
    %139 = vmatpush2.msra.mxu0 0.0
    %140 = vmatprep.subr.mxu0 0.0
    %141 = vmatpush2.msra.mxu0 0.0
    %142 = vmatprep.subr.mxu0 0.0
    %143 = vmatpush2.msra.mxu0 0.0
    %144 = vmatprep.subr.mxu0 0.0
    %145 = vmatpush2.msra.mxu0 0.0
    %146 = vmatprep.mubr.f32.mxu0 0.0
    %147 = vmatmul.mubr.f32.gmra.mxu0 %v43
    %v148 = vpop.f32.mrf.mxu0
    %v149 = vadd.f32 %v80, %v148
    %v150 = vpop.f32.mrf.mxu0
    %151 = vmatprep.mubr.f32.mxu0 0.0
    %152 = vmatmul.mubr.f32.gmra.mxu0 %v44
    %v153 = vpop.f32.mrf.mxu0
    %v154 = vadd.f32 %v80, %v153
    %v155 = vpop.f32.mrf.mxu0
    %156 = vmatprep.mubr.f32.mxu0 0.0
    %157 = vmatmul.mubr.f32.gmra.mxu0 %v45
    %v158 = vpop.f32.mrf.mxu0
    %v159 = vadd.f32 %v80, %v158
    %v160 = vpop.f32.mrf.mxu0
    %161 = vmatprep.mubr.f32.mxu0 0.0
    %162 = vmatmul.mubr.f32.gmra.mxu0 %v46
    %v163 = vpop.f32.mrf.mxu0
    %v164 = vadd.f32 %v80, %v163
    %v165 = vpop.f32.mrf.mxu0
    %166 = vmatprep.mubr.f32.mxu0 0.0
    %167 = vmatmul.mubr.f32.gmra.mxu0 %v47
    %v168 = vpop.f32.mrf.mxu0
    %v169 = vadd.f32 %v80, %v168
    %v170 = vpop.f32.mrf.mxu0
    %171 = vmatprep.mubr.f32.mxu0 0.0
    %172 = vmatmul.mubr.f32.gmra.mxu0 %v48
    %v173 = vpop.f32.mrf.mxu0
    %v174 = vadd.f32 %v80, %v173
    %v175 = vpop.f32.mrf.mxu0
    %176 = vmatprep.mubr.f32.mxu0 0.0
    %177 = vmatmul.mubr.f32.gmra.mxu0 %v49
    %v178 = vpop.f32.mrf.mxu0
    %v179 = vadd.f32 %v80, %v178
    %v180 = vpop.f32.mrf.mxu0
    %181 = vmatprep.mubr.f32.mxu0 0.0
    %182 = vmatmul.mubr.f32.gmra.mxu0 %v50
    %v183 = vpop.f32.mrf.mxu0
    %v184 = vadd.f32 %v80, %v183
    %v185 = vpop.f32.mrf.mxu0
    %186 = vmatprep.mubr.f32.mxu0 0.0
    %187 = vmatmul.mubr.f32.gmra.mxu0 %v51
    %v188 = vpop.f32.mrf.mxu0
    %v189 = vadd.f32 %v80, %v188
    %v190 = vpop.f32.mrf.mxu0
    %191 = vmatprep.mubr.f32.mxu0 0.0
    %192 = vmatmul.mubr.f32.gmra.mxu0 %v52
    %v193 = vpop.f32.mrf.mxu0
    %v194 = vadd.f32 %v80, %v193
    %v195 = vpop.f32.mrf.mxu0
    %196 = vmatprep.mubr.f32.mxu0 0.0
    %197 = vmatmul.mubr.f32.gmra.mxu0 %v53
    %v198 = vpop.f32.mrf.mxu0
    %v199 = vadd.f32 %v80, %v198
    %v200 = vpop.f32.mrf.mxu0
    %201 = vmatprep.mubr.f32.mxu0 0.0
    %202 = vmatmul.mubr.f32.gmra.mxu0 %v54
    %v203 = vpop.f32.mrf.mxu0
    %v204 = vadd.f32 %v80, %v203
    %v205 = vpop.f32.mrf.mxu0
    %206 = vmatprep.mubr.f32.mxu0 0.0
    %207 = vmatmul.mubr.f32.gmra.mxu0 %v55
    %v208 = vpop.f32.mrf.mxu0
    %v209 = vadd.f32 %v80, %v208
    %v210 = vpop.f32.mrf.mxu0
    %211 = vmatprep.mubr.f32.mxu0 0.0
    %212 = vmatmul.mubr.f32.gmra.mxu0 %v56
    %v213 = vpop.f32.mrf.mxu0
    %v214 = vadd.f32 %v80, %v213
    %v215 = vpop.f32.mrf.mxu0
    %216 = vmatprep.mubr.f32.mxu0 0.0
    %217 = vmatmul.mubr.f32.gmra.mxu0 %v57
    %v218 = vpop.f32.mrf.mxu0
    %v219 = vadd.f32 %v80, %v218
    %v220 = vpop.f32.mrf.mxu0
    %221 = vmatprep.mubr.f32.mxu0 0.0
    %222 = vmatmul.mubr.f32.gmra.mxu0 %v58
    %v223 = vpop.f32.mrf.mxu0
    %v224 = vadd.f32 %v80, %v223
    %v225 = vpop.f32.mrf.mxu0
    %226 = vdwg.mxu0
    %v227 = vpack.c.bf16 %v154, %v149
    %v228 = vpack.c.bf16 %v164, %v159
    %v229 = vpack.c.bf16 %v174, %v169
    %v230 = vpack.c.bf16 %v184, %v179
    %v231 = vpack.c.bf16 %v194, %v189
    %v232 = vpack.c.bf16 %v204, %v199
    %v233 = vpack.c.bf16 %v214, %v209
    %v234 = vpack.c.bf16 %v224, %v219
    %v243 = vunpack.c.l.b16 %v227
    %v244 = vunpack.c.h.b16 %v227
    %v245 = vunpack.c.l.b16 %v228
    %v246 = vunpack.c.h.b16 %v228
    %v247 = vunpack.c.l.b16 %v229
    %v248 = vunpack.c.h.b16 %v229
    %v249 = vunpack.c.l.b16 %v230
    %v250 = vunpack.c.h.b16 %v230
    %v251 = vunpack.c.l.b16 %v231
    %v252 = vunpack.c.h.b16 %v231
    %v253 = vunpack.c.l.b16 %v232
    %v254 = vunpack.c.h.b16 %v232
    %v255 = vunpack.c.l.b16 %v233
    %v256 = vunpack.c.h.b16 %v233
    %v257 = vunpack.c.l.b16 %v234
    %v258 = vunpack.c.h.b16 %v234
    %v259 = vpack.c.b16 %v243, %v243
    %v260 = vpack.c.b16 %v244, %v244
    %v261 = vpack.c.b16 %v245, %v245
    %v262 = vpack.c.b16 %v246, %v246
    %v263 = vpack.c.b16 %v247, %v247
    %v264 = vpack.c.b16 %v248, %v248
    %v265 = vpack.c.b16 %v249, %v249
    %v266 = vpack.c.b16 %v250, %v250
    %v267 = vpack.c.b16 %v251, %v251
    %v268 = vpack.c.b16 %v252, %v252
    %v269 = vpack.c.b16 %v253, %v253
    %v270 = vpack.c.b16 %v254, %v254
    %v271 = vpack.c.b16 %v255, %v255
    %v272 = vpack.c.b16 %v256, %v256
    %v273 = vpack.c.b16 %v257, %v257
    %v274 = vpack.c.b16 %v258, %v258
    %291 = vst [vmem:[#allocation7] sm:$0xf] %v259
    %292 = vst [vmem:[#allocation7 + $0x4] sm:$0xf] %v260
    %293 = vst [vmem:[#allocation7 + $0x8] sm:$0xf] %v261
    %294 = vst [vmem:[#allocation7 + $0xc] sm:$0xf] %v262
    %295 = vst [vmem:[#allocation7 + $0x10] sm:$0xf] %v263
    %296 = vst [vmem:[#allocation7 + $0x14] sm:$0xf] %v264
    %297 = vst [vmem:[#allocation7 + $0x18] sm:$0xf] %v265
    %298 = vst [vmem:[#allocation7 + $0x1c] sm:$0xf] %v266
    %299 = vst [vmem:[#allocation7 + $0x20] sm:$0xf] %v267
    %300 = vst [vmem:[#allocation7 + $0x24] sm:$0xf] %v268
    %301 = vst [vmem:[#allocation7 + $0x28] sm:$0xf] %v269
    %302 = vst [vmem:[#allocation7 + $0x2c] sm:$0xf] %v270
    %303 = vst [vmem:[#allocation7 + $0x30] sm:$0xf] %v271
    %304 = vst [vmem:[#allocation7 + $0x34] sm:$0xf] %v272
    %305 = vst [vmem:[#allocation7 + $0x38] sm:$0xf] %v273
    %306 = vst [vmem:[#allocation7 + $0x3c] sm:$0xf] %v274
    // Predicated region
    $region22: #{tpu_custom_call.1} parent=1 // pred_check
      _
    $region23: #{tpu_custom_call.1} parent=1 // pred_check_branch
      %308 = sbr.rel (0) target = $region25
    $region24: #{tpu_custom_call.1} parent=1 // pred_region
      %s310 = ssub.s32 1024, 1024
      %311 = vsyncadd [#allocation4], %s310
      %s312 = sshll.u32 [#allocation7], 4
      %s313 = int_to_ptr.vmem [resolvable:$true] %s312
      %318 = dma.vmem_to_hbm [thread:$0]  %s313, 1024, %s3, [#allocation4], 64, 64, 4
    $region25: #{tpu_custom_call.1} parent=1 // pred_fallthru
      _
    // Predicated region
    $region26: #{tpu_custom_call.1} parent=1 // pred_check
      _
    $region27: #{tpu_custom_call.1} parent=1 // pred_check_branch
      %320 = sbr.rel (0) target = $region29
    $region28: #{tpu_custom_call.1} parent=1 // pred_region
      %321 = dma.done [#allocation4], 1024
    $region29: #{tpu_custom_call.1} parent=1 // pred_fallthru
      _
    %322 = vsyncpa [#allocation3], 1
    %323 = vsyncpa [#allocation6], 1
    %324 = vsyncpa [#allocation4], 1

</llo_original>
